<compile_context>
chip_gen: v6e
topology: v6e:2x2x1
jax: 0.10.0
libtpu: 0.0.40
codegen_flags: <defaults>
</compile_context>

<pallas_src>
import jax
import jax.numpy as jnp
from jax import lax
from jax.experimental import pallas as pl
from jax.experimental.pallas import tpu as pltpu

LANE = 128  # lane (fast) axis width


def modrelu_kernel(b_ref, re_ref, im_ref, ore_ref, oim_ref):
    """re/im refs: (row_tile, LANE) tiles of the flattened planes."""
    b = b_ref[0]  # scalar bias from SMEM

    re = re_ref[...].astype(jnp.float32)
    im = im_ref[...].astype(jnp.float32)

    sq = re * re + im * im                 # |x|^2
    nonzero = sq > 0.0
    inv_mag = lax.rsqrt(jnp.where(nonzero, sq, 1.0))   # EUP op (free slot)
    mag = sq * inv_mag                     # |x| = |x|^2 * rsqrt(|x|^2)

    scaled = jnp.maximum(mag + b, 0.0)     # relu(|x| + b)
    ratio = scaled * inv_mag               # relu(|x|+b) / |x|, shared factor

    # exp(i*angle(x)) = x/|x| for x != 0; angle(0) = 0 -> factor is 1 + 0j,
    # matching torch.angle / torch.exp semantics at zero.
    ore_ref[...] = jnp.where(nonzero, ratio * re, scaled).astype(ore_ref.dtype)
    oim_ref[...] = jnp.where(nonzero, ratio * im, 0.0).astype(oim_ref.dtype)


def _round_up(x, m):
    return ((x + m - 1) // m) * m


def _target_rows():
    """Generation-aware max rows per grid step."""
    try:
        kind = jax.devices()[0].device_kind.lower()
    except Exception:  # pragma: no cover - defensive
        return 2048
    # Older gens (<= v5): tighter 16 MiB scoped-VMEM default -> keep 2048 rows
    # (8 MiB resident). v6e / v7x: 4096 rows = 2 MiB blocks, 16 MiB resident,
    # comfortably under the 32 MiB scoped default.
    if any(tag in kind for tag in ("v2", "v3", "v4", "v5")):
        return 2048
    return 4096


def _pick_row_tile(rows, target):
    if rows <= 8:
        return max(rows, 1)  # single full-extent block (tiny input)
    # Aim for >= ~4 grid steps so megacore (v7x) shards the axis and the
    # pipeline has work to overlap, capped at the per-generation target.
    tile = _round_up(pl.cdiv(rows, 4), 8)
    return min(target, tile)


def modrelu(x_re, x_im, b):
    """x_re, x_im: real/imag planes of identical shape; b: scalar bias."""
    assert x_re.shape == x_im.shape
    orig_shape = x_re.shape
    dtype = x_re.dtype
    n = x_re.size
    itemsize = jnp.dtype(dtype).itemsize

    if n % LANE == 0:
        # Fast path: pure reshape (no data movement) into a lane-dense slab.
        rows = n // LANE
        pad = 0
        re2d = x_re.reshape(rows, LANE)
        im2d = x_im.reshape(rows, LANE)
    else:
        # Ragged tail fallback: pad the flat planes (one extra wrapper copy,
        # only for sizes not divisible by 128).
        # TODO(synk): replace with a tiny jnp epilogue over the <128-elem tail.
        rows = pl.cdiv(n, LANE)
        pad = rows * LANE - n
        re2d = jnp.pad(x_re.reshape(-1), (0, pad)).reshape(rows, LANE)
        im2d = jnp.pad(x_im.reshape(-1), (0, pad)).reshape(rows, LANE)

    row_tile = _pick_row_tile(rows, _target_rows())
    grid = (pl.cdiv(rows, row_tile),)
    blk = pl.BlockSpec((row_tile, LANE), lambda i: (i, 0))

    b_arr = jnp.asarray(b, jnp.float32).reshape(1)

    cost = pl.CostEstimate(
        flops=12 * n,                      # a handful of VPU ops per element
        transcendentals=n,                 # one rsqrt per element
        bytes_accessed=4 * itemsize * n,   # 2 planes in + 2 planes out
    )

    out_re2d, out_im2d = pl.pallas_call(
        modrelu_kernel,
        out_shape=(
            jax.ShapeDtypeStruct((rows, LANE), dtype),
            jax.ShapeDtypeStruct((rows, LANE), dtype),
        ),
        grid_spec=pltpu.PrefetchScalarGridSpec(
            num_scalar_prefetch=0,
            grid=grid,
            in_specs=[
                pl.BlockSpec(memory_space=pltpu.MemorySpace.SMEM),  # scalar b
                blk,                                                # real plane
                blk,                                                # imag plane
            ],
            out_specs=(blk, blk),
        ),
        compiler_params=pltpu.CompilerParams(
            dimension_semantics=("parallel",),
        ),
        cost_estimate=cost,
    )(b_arr, re2d, im2d)

    if pad:
        out_re = out_re2d.reshape(-1)[:n].reshape(orig_shape)
        out_im = out_im2d.reshape(-1)[:n].reshape(orig_shape)
    else:
        out_re = out_re2d.reshape(orig_shape)
        out_im = out_im2d.reshape(orig_shape)
    return out_re, out_im


def _reference(x_re, x_im, b):
    x_c = x_re.astype(jnp.float32) + 1j * x_im.astype(jnp.float32)
    mag = jnp.abs(x_c)
    return (jnp.maximum(mag + b, 0.0) * jnp.exp(1j * jnp.angle(x_c))).astype(
        jnp.complex64
    )


if __name__ == "__main__":
    key = jax.random.PRNGKey(0)
    k_re, k_im = jax.random.split(key)

    # small complex NCHW-style input (B, C, H, W), matching the STFT
    # discriminator's complex feature maps
    shape = (2, 4, 16, 16)
    x_re = jax.random.normal(k_re, shape, dtype=jnp.float32)
    x_im = jax.random.normal(k_im, shape, dtype=jnp.float32)

    # nn.Parameter(torch.tensor(0.0)) -> deterministic scalar bias b = 0.0
    b = jnp.float32(0.0)

    out_re, out_im = modrelu(x_re, x_im, b)
    out_re = jax.block_until_ready(out_re)
    out_im = jax.block_until_ready(out_im)

    got = (out_re + 1j * out_im).astype(jnp.complex64)
    ref = _reference(x_re, x_im, b)
    assert jnp.allclose(got, ref, atol=1e-5, rtol=1e-5)

    # extra check with a negative bias so the ReLU gate actually clips
    b2 = jnp.float32(-0.5)
    out_re2, out_im2 = modrelu(x_re, x_im, b2)
    got2 = (jax.block_until_ready(out_re2)
            + 1j * jax.block_until_ready(out_im2)).astype(jnp.complex64)
    ref2 = _reference(x_re, x_im, b2)
    assert jnp.allclose(got2, ref2, atol=1e-5, rtol=1e-5)

    print("KERNEL_OK")
</pallas_src>

<mosaic_0001>
module attributes {stable_mosaic.version = 11 : i64} {
  func.func @modrelu_kernel(%arg0: i32, %arg1: memref<1xf32, #tpu.memory_space<smem>>, %arg2: memref<8x128xf32, #tpu.memory_space<vmem>>, %arg3: memref<8x128xf32, #tpu.memory_space<vmem>>, %arg4: memref<8x128xf32, #tpu.memory_space<vmem>>, %arg5: memref<8x128xf32, #tpu.memory_space<vmem>>) attributes {dimension_semantics = [#tpu.dimension_semantics<parallel>], iteration_bounds = array<i64: 2>, scalar_prefetch = 0 : i64, scratch_operands = 0 : i64, tpu.core_type = #tpu.core_type<tc>, window_params = [{transform_indices = @transform_0, window_bounds = array<i64: 1>}, {transform_indices = @transform_1, window_bounds = array<i64: 8, 128>}, {transform_indices = @transform_2, window_bounds = array<i64: 8, 128>}, {transform_indices = @transform_3, window_bounds = array<i64: 8, 128>}, {transform_indices = @transform_4, window_bounds = array<i64: 8, 128>}]} {
    %c0 = arith.constant 0 : index
    %0 = memref.load %arg1[%c0] : memref<1xf32, #tpu.memory_space<smem>>
    %c0_0 = arith.constant 0 : index
    %c0_1 = arith.constant 0 : index
    %1 = vector.load %arg2[%c0_0, %c0_1] : memref<8x128xf32, #tpu.memory_space<vmem>>, vector<8x128xf32>
    %c0_2 = arith.constant 0 : index
    %c0_3 = arith.constant 0 : index
    %2 = vector.load %arg3[%c0_2, %c0_3] : memref<8x128xf32, #tpu.memory_space<vmem>>, vector<8x128xf32>
    %3 = arith.mulf %1, %1 : vector<8x128xf32>
    %4 = arith.mulf %2, %2 : vector<8x128xf32>
    %5 = arith.addf %3, %4 : vector<8x128xf32>
    %cst = arith.constant 0.000000e+00 : f32
    %6 = vector.broadcast %cst : f32 to vector<8x128xf32>
    %7 = arith.cmpf ogt, %5, %6 : vector<8x128xf32>
    %cst_4 = arith.constant 1.000000e+00 : f32
    %8 = vector.broadcast %cst_4 : f32 to vector<8x128xf32>
    %9 = arith.select %7, %5, %8 : vector<8x128xi1>, vector<8x128xf32>
    %10 = math.rsqrt %9 : vector<8x128xf32>
    %11 = arith.mulf %5, %10 : vector<8x128xf32>
    %12 = vector.broadcast %0 : f32 to vector<8x128xf32>
    %13 = arith.addf %11, %12 : vector<8x128xf32>
    %cst_5 = arith.constant 0.000000e+00 : f32
    %14 = vector.broadcast %cst_5 : f32 to vector<8x128xf32>
    %15 = arith.maximumf %13, %14 : vector<8x128xf32>
    %16 = arith.mulf %15, %10 : vector<8x128xf32>
    %17 = arith.mulf %16, %1 : vector<8x128xf32>
    %18 = arith.select %7, %17, %15 : vector<8x128xi1>, vector<8x128xf32>
    %c0_6 = arith.constant 0 : index
    %c0_7 = arith.constant 0 : index
    %19 = vector.load %arg4[%c0_6, %c0_7] : memref<8x128xf32, #tpu.memory_space<vmem>>, vector<8x128xf32>
    tpu.vector_store %arg4[%c0_6, %c0_7], %18 {strides = array<i32>} : memref<8x128xf32, #tpu.memory_space<vmem>>, vector<8x128xf32>,
    %20 = arith.mulf %16, %2 : vector<8x128xf32>
    %cst_8 = arith.constant 0.000000e+00 : f32
    %21 = vector.broadcast %cst_8 : f32 to vector<8x128xf32>
    %22 = arith.select %7, %20, %21 : vector<8x128xi1>, vector<8x128xf32>
    %c0_9 = arith.constant 0 : index
    %c0_10 = arith.constant 0 : index
    %23 = vector.load %arg5[%c0_9, %c0_10] : memref<8x128xf32, #tpu.memory_space<vmem>>, vector<8x128xf32>
    tpu.vector_store %arg5[%c0_9, %c0_10], %22 {strides = array<i32>} : memref<8x128xf32, #tpu.memory_space<vmem>>, vector<8x128xf32>,
    return
  }
  func.func @transform_0(%arg0: i32) -> i32 {
    %c0_i32 = arith.constant 0 : i32
    %c0_i32_0 = arith.constant 0 : i32
    return %c0_i32 : i32
  }
  func.func @transform_1(%arg0: i32) -> (i32, i32) {
    %c0_i32 = arith.constant 0 : i32
    %c0_i32_0 = arith.constant 0 : i32
    return %arg0, %c0_i32 : i32, i32
  }
  func.func @transform_2(%arg0: i32) -> (i32, i32) {
    %c0_i32 = arith.constant 0 : i32
    %c0_i32_0 = arith.constant 0 : i32
    return %arg0, %c0_i32 : i32, i32
  }
  func.func @transform_3(%arg0: i32) -> (i32, i32) {
    %c0_i32 = arith.constant 0 : i32
    %c0_i32_0 = arith.constant 0 : i32
    return %arg0, %c0_i32 : i32, i32
  }
  func.func @transform_4(%arg0: i32) -> (i32, i32) {
    %c0_i32 = arith.constant 0 : i32
    %c0_i32_0 = arith.constant 0 : i32
    return %arg0, %c0_i32 : i32, i32
  }
}

</mosaic_0001>

<llo_original>
// kernel: tpu_custom_call.1
$region0: #{tpu_custom_call.1}
  #allocation0 [shape = 'u32[]', space=smem, size = 0x4, offset = 0x4, fixed_abs, tag = 'smem constant byte address 0x4 - core index']
  #allocation1 [shape = 'u32[144,128]{1,0:T(1,128)}', space=vmem, size = 0x12000, scoped, tag = 'internal scratch']
  #allocation2 [shape = 'f32[1]{0:T(128)S(6)}', space=smem, size = 0x200, scoped, tag = 'scoped memory for tpu_custom_call.1']
  %s0 = inlined_call_operand.<no memory space> [shape: f32[1], index: 0, kind: input, shape index: {}]
  %s1 = inlined_call_operand.hbm [shape: f32[16,128], index: 1, kind: input, shape index: {}]
  %s2 = inlined_call_operand.hbm [shape: f32[16,128], index: 2, kind: input, shape index: {}]
  %s3 = inlined_call_operand.hbm [shape: f32[16,128], index: 3, kind: output, shape index: {0}]
  %s4 = inlined_call_operand.hbm [shape: f32[16,128], index: 4, kind: output, shape index: {1}]
  %5 = xla_tuple %s3, %s4
  %s6 = sld [smem:[#allocation0]]
  $region61: #{tpu_custom_call.1} parent=0
    _
  %s8 = ssub.s32 1, %s6
  %s9 = scalar_select 0, %s8, %s6
  %10 = sst [smem:[#allocation2]] %s0
  $region1: #{tpu_custom_call.1} parent=0
    #allocation3 [shape = 'u8[8192]{0}', space=vmem, size = 0x2000, scoped, tag = 'input window, operand 1']
    #allocation4 [shape = 's32[2]{0}', space=sflag, size = 0x8, scoped, tag = 'scoped memory for tpu_custom_call.1']
    #allocation5 [shape = 's32[2]{0}', space=sflag, size = 0x8, scoped, tag = 'scoped memory for tpu_custom_call.1']
    #allocation6 [shape = 'u8[8192]{0}', space=vmem, size = 0x2000, scoped, tag = 'input window, operand 2']
    #allocation7 [shape = 's32[2]{0}', space=sflag, size = 0x8, scoped, tag = 'scoped memory for tpu_custom_call.1']
    #allocation8 [shape = 'u8[8192]{0}', space=vmem, size = 0x2000, scoped, tag = 'output window, operand 0']
    #allocation9 [shape = 'u8[8192]{0}', space=vmem, size = 0x2000, scoped, tag = 'output window, operand 1']
    #allocation10 [shape = 's32[2]{0}', space=sflag, size = 0x8, scoped, tag = 'scoped memory for tpu_custom_call.1']
    %11 = vsyncpa [#allocation4], 0
    %s12 = scalar_lea.sflag [#allocation4], 1
    %13 = vsyncpa %s12, 0
    %14 = vsyncpa [#allocation7], 0
    %s15 = scalar_lea.sflag [#allocation7], 1
    %16 = vsyncpa %s15, 0
    %17 = vsyncpa [#allocation5], 0
    %s18 = scalar_lea.sflag [#allocation5], 1
    %19 = vsyncpa %s18, 0
    %20 = vsyncpa [#allocation10], 0
    %s21 = scalar_lea.sflag [#allocation10], 1
    %22 = vsyncpa %s21, 0
    loop: start=0, step=1, limit=4
    $region2: #{tpu_custom_call.1} parent=1 // loop_pre_header
      _
    $region3: #{tpu_custom_call.1} parent=1 // loop_header
      %s24 = sphi 0, %s28
      %p25 = scmp.ge.s32.totalorder %s24, 4
      %s32 = sphi 0, %s32
      %s34 = sphi 0, %s32
      %s35 = sphi 0, %s34
      %s49 = sphi 0, %s35
      %s55 = sphi 0, %s57
      %s58 = sphi 0, %s55
      %s59 = sphi 0, %s58
      %s75 = sphi 0, %s59
      %s81 = sphi 0, %s83
      %s84 = sphi 0, %s81
      %s85 = sphi 0, %s84
      %s101 = sphi 0, %s85
      %s107 = sphi 0, %s109
      %s110 = sphi 0, %s107
      %s111 = sphi 0, %s110
      %s127 = sphi 0, %s111
      %s133 = sphi 0, %s135
      %s136 = sphi 0, %s133
      %s137 = sphi 0, %s136
      %s153 = sphi 0, %s137
    $region4: #{tpu_custom_call.1} parent=1 // loop_header_branch
      %27 = sbr.rel (%p25) target = $region8
    $region5: #{tpu_custom_call.1} parent=1 // loop_body
      %s29 = ssub.s32 %s24, 1
      %s30 = ssub.s32 %s24, 2
      %s31 = sadd.s32 %s24, 1
      %s33 = sadd.s32 %s32, 1
      %p36 = scmp.eq.s32.totalorder %s24, 1
      %p37 = scmp.ne.s32.totalorder %s32, %s34
      %p38 = scmp.eq.s32.totalorder %s24, 0
      %p39 = por %p37, %p38
      %p40 = scmp.ne.s32.totalorder %s32, %s34
      %p41 = scmp.eq.s32.totalorder %s29, 1
      %p42 = por %p40, %p41
      %p43 = scmp.ne.s32.totalorder %s34, %s35
      %p44 = scmp.eq.s32.totalorder %s29, 0
      %p45 = por %p43, %p44
      %p46 = scmp.ne.s32.totalorder %s34, %s35
      %p47 = scmp.eq.s32.totalorder %s30, 1
      %p48 = por %p46, %p47
      %p50 = scmp.ne.s32.totalorder %s35, %s49
      %p51 = scmp.eq.s32.totalorder %s30, 0
      %p52 = por %p50, %p51
      %s53 = ssub.s32 %s24, %s31
      %p54 = scmp.eq.s32.totalorder %s53, 0
      %s56 = sadd.s32 %s55, 1
      %s57 = scalar_select %p54, %s55, %s56
      %p60 = pneg %p54
      %p61 = scmp.eq.s32.totalorder %s24, 1
      %p62 = por %p60, %p61
      %p63 = scmp.ne.s32.totalorder %s55, %s58
      %p64 = scmp.eq.s32.totalorder %s24, 0
      %p65 = por %p63, %p64
      %p66 = scmp.ne.s32.totalorder %s55, %s58
      %p67 = scmp.eq.s32.totalorder %s29, 1
      %p68 = por %p66, %p67
      %p69 = scmp.ne.s32.totalorder %s58, %s59
      %p70 = scmp.eq.s32.totalorder %s29, 0
      %p71 = por %p69, %p70
      %p72 = scmp.ne.s32.totalorder %s58, %s59
      %p73 = scmp.eq.s32.totalorder %s30, 1
      %p74 = por %p72, %p73
      %p76 = scmp.ne.s32.totalorder %s59, %s75
      %p77 = scmp.eq.s32.totalorder %s30, 0
      %p78 = por %p76, %p77
      %s79 = ssub.s32 %s24, %s31
      %p80 = scmp.eq.s32.totalorder %s79, 0
      %s82 = sadd.s32 %s81, 1
      %s83 = scalar_select %p80, %s81, %s82
      %p86 = pneg %p80
      %p87 = scmp.eq.s32.totalorder %s24, 1
      %p88 = por %p86, %p87
      %p89 = scmp.ne.s32.totalorder %s81, %s84
      %p90 = scmp.eq.s32.totalorder %s24, 0
      %p91 = por %p89, %p90
      %p92 = scmp.ne.s32.totalorder %s81, %s84
      %p93 = scmp.eq.s32.totalorder %s29, 1
      %p94 = por %p92, %p93
      %p95 = scmp.ne.s32.totalorder %s84, %s85
      %p96 = scmp.eq.s32.totalorder %s29, 0
      %p97 = por %p95, %p96
      %p98 = scmp.ne.s32.totalorder %s84, %s85
      %p99 = scmp.eq.s32.totalorder %s30, 1
      %p100 = por %p98, %p99
      %p102 = scmp.ne.s32.totalorder %s85, %s101
      %p103 = scmp.eq.s32.totalorder %s30, 0
      %p104 = por %p102, %p103
      %s105 = ssub.s32 %s24, %s31
      %p106 = scmp.eq.s32.totalorder %s105, 0
      %s108 = sadd.s32 %s107, 1
      %s109 = scalar_select %p106, %s107, %s108
      %p112 = pneg %p106
      %p113 = scmp.eq.s32.totalorder %s24, 1
      %p114 = por %p112, %p113
      %p115 = scmp.ne.s32.totalorder %s107, %s110
      %p116 = scmp.eq.s32.totalorder %s24, 0
      %p117 = por %p115, %p116
      %p118 = scmp.ne.s32.totalorder %s107, %s110
      %p119 = scmp.eq.s32.totalorder %s29, 1
      %p120 = por %p118, %p119
      %p121 = scmp.ne.s32.totalorder %s110, %s111
      %p122 = scmp.eq.s32.totalorder %s29, 0
      %p123 = por %p121, %p122
      %p124 = scmp.ne.s32.totalorder %s110, %s111
      %p125 = scmp.eq.s32.totalorder %s30, 1
      %p126 = por %p124, %p125
      %p128 = scmp.ne.s32.totalorder %s111, %s127
      %p129 = scmp.eq.s32.totalorder %s30, 0
      %p130 = por %p128, %p129
      %s131 = ssub.s32 %s24, %s31
      %p132 = scmp.eq.s32.totalorder %s131, 0
      %s134 = sadd.s32 %s133, 1
      %s135 = scalar_select %p132, %s133, %s134
      %p138 = pneg %p132
      %p139 = scmp.eq.s32.totalorder %s24, 1
      %p140 = por %p138, %p139
      %p141 = scmp.ne.s32.totalorder %s133, %s136
      %p142 = scmp.eq.s32.totalorder %s24, 0
      %p143 = por %p141, %p142
      %p144 = scmp.ne.s32.totalorder %s133, %s136
      %p145 = scmp.eq.s32.totalorder %s29, 1
      %p146 = por %p144, %p145
      %p147 = scmp.ne.s32.totalorder %s136, %s137
      %p148 = scmp.eq.s32.totalorder %s29, 0
      %p149 = por %p147, %p148
      %p150 = scmp.ne.s32.totalorder %s136, %s137
      %p151 = scmp.eq.s32.totalorder %s30, 1
      %p152 = por %p150, %p151
      %p154 = scmp.ne.s32.totalorder %s137, %s153
      %p155 = scmp.eq.s32.totalorder %s30, 0
      %p156 = por %p154, %p155
      %p157 = scmp.le.s32.totalorder 1, %s24
      %p158 = scmp.lt.s32.totalorder %s24, 3
      %p159 = pnand %p157, %p158
      %p160 = pneg %p159
      // Predicated region
      $region9: #{tpu_custom_call.1} parent=5 // pred_check
        _
      $region10: #{tpu_custom_call.1} parent=5 // pred_check_branch
        %162 = sbr.rel (%p159) target = $region12
      $region11: #{tpu_custom_call.1} parent=5 // pred_region
        %s163 = ssub.s32 %s24, 1
        // Predicated region
        $region13: #{tpu_custom_call.1} parent=11 // pred_check
          %p164 = pneg %p45
        $region14: #{tpu_custom_call.1} parent=11 // pred_check_branch
          %166 = sbr.rel (%p164) target = $region16
        $region15: #{tpu_custom_call.1} parent=11 // pred_region
          _
        $region16: #{tpu_custom_call.1} parent=11 // pred_fallthru
          _
      $region12: #{tpu_custom_call.1} parent=5 // pred_fallthru
        _
      %p167 = scmp.lt.s32.totalorder %s24, 2
      // Predicated region
      $region17: #{tpu_custom_call.1} parent=5 // pred_check
        %p168 = pneg %p167
      $region18: #{tpu_custom_call.1} parent=5 // pred_check_branch
        %170 = sbr.rel (%p168) target = $region20
      $region19: #{tpu_custom_call.1} parent=5 // pred_region
        // Predicated region
        $region21: #{tpu_custom_call.1} parent=19 // pred_check
          %p171 = pneg %p65
        $region22: #{tpu_custom_call.1} parent=19 // pred_check_branch
          %173 = sbr.rel (%p171) target = $region24
        $region23: #{tpu_custom_call.1} parent=19 // pred_region
          %s174 = sand.u32 %s55, 1
          %s175 = scalar_lea.sflag [#allocation4], %s174
          %s176 = sand.u32 %s55, 1
          %s177 = smul.addr %s176, 8
          %s178 = scalar_lea.vmem [#allocation3], %s177
          %s180 = ssub.s32 128, 128
          %181 = vsyncadd %s175, %s180
          %s182 = smul.addr %s24, 128
          %s183 = scalar_lea.hbm %s1, %s182
          %s185 = sshll.u32 %s178, 4
          %s186 = int_to_ptr.vmem [resolvable:$true] %s185
          %188 = dma.hbm_to_vmem [thread:$0]  %s183, 128, %s186, %s175
        $region24: #{tpu_custom_call.1} parent=19 // pred_fallthru
          _
        // Predicated region
        $region25: #{tpu_custom_call.1} parent=19 // pred_check
          %p189 = pneg %p91
        $region26: #{tpu_custom_call.1} parent=19 // pred_check_branch
          %191 = sbr.rel (%p189) target = $region28
        $region27: #{tpu_custom_call.1} parent=19 // pred_region
          %s192 = sand.u32 %s81, 1
          %s193 = scalar_lea.sflag [#allocation7], %s192
          %s194 = sand.u32 %s81, 1
          %s195 = smul.addr %s194, 8
          %s196 = scalar_lea.vmem [#allocation6], %s195
          %s198 = ssub.s32 128, 128
          %199 = vsyncadd %s193, %s198
          %s200 = smul.addr %s24, 128
          %s201 = scalar_lea.hbm %s2, %s200
          %s203 = sshll.u32 %s196, 4
          %s204 = int_to_ptr.vmem [resolvable:$true] %s203
          %206 = dma.hbm_to_vmem [thread:$0]  %s201, 128, %s204, %s193
        $region28: #{tpu_custom_call.1} parent=19 // pred_fallthru
          _
      $region20: #{tpu_custom_call.1} parent=5 // pred_fallthru
        _
      %p207 = scmp.le.s32.totalorder 1, %s24
      %p208 = scmp.lt.s32.totalorder %s24, 3
      %p209 = pnand %p207, %p208
      %p210 = pneg %p209
      // Predicated region
      $region29: #{tpu_custom_call.1} parent=5 // pred_check
        _
      $region30: #{tpu_custom_call.1} parent=5 // pred_check_branch
        %212 = sbr.rel (%p209) target = $region32
      $region31: #{tpu_custom_call.1} parent=5 // pred_region
        %s213 = ssub.s32 %s24, 1
        %s214 = sand.u32 %s58, 1
        %s215 = scalar_lea.sflag [#allocation4], %s214
        %s216 = sand.u32 %s58, 1
        %s217 = smul.addr %s216, 8
        %s218 = scalar_lea.vmem [#allocation3], %s217
        // Predicated region
        $region33: #{tpu_custom_call.1} parent=31 // pred_check
          %p219 = pneg %p71
        $region34: #{tpu_custom_call.1} parent=31 // pred_check_branch
          %221 = sbr.rel (%p219) target = $region36
        $region35: #{tpu_custom_call.1} parent=31 // pred_region
          %222 = dma.done %s215, 128
        $region36: #{tpu_custom_call.1} parent=31 // pred_fallthru
          _
        %s223 = sand.u32 %s84, 1
        %s224 = scalar_lea.sflag [#allocation7], %s223
        %s225 = sand.u32 %s84, 1
        %s226 = smul.addr %s225, 8
        %s227 = scalar_lea.vmem [#allocation6], %s226
        // Predicated region
        $region37: #{tpu_custom_call.1} parent=31 // pred_check
          %p228 = pneg %p97
        $region38: #{tpu_custom_call.1} parent=31 // pred_check_branch
          %230 = sbr.rel (%p228) target = $region40
        $region39: #{tpu_custom_call.1} parent=31 // pred_region
          %231 = dma.done %s224, 128
        $region40: #{tpu_custom_call.1} parent=31 // pred_fallthru
          _
        %p232 = pneg %p45
        %p233 = pneg %p42
        %s234 = sand.u32 %s58, 1
        %s235 = scalar_lea.sflag [#allocation4], %s234
        %s236 = sand.u32 %s58, 1
        %s237 = smul.addr %s236, 8
        %s238 = scalar_lea.vmem [#allocation3], %s237
        %p239 = pneg %p71
        %p240 = pneg %p68
        %s241 = sand.u32 %s84, 1
        %s242 = scalar_lea.sflag [#allocation7], %s241
        %s243 = sand.u32 %s84, 1
        %s244 = smul.addr %s243, 8
        %s245 = scalar_lea.vmem [#allocation6], %s244
        %p246 = pneg %p97
        %p247 = pneg %p94
        %p248 = pneg %p123
        %p249 = pneg %p120
        %s250 = sand.u32 %s110, 1
        %s251 = scalar_lea.sflag [#allocation5], %s250
        %s252 = sand.u32 %s110, 1
        %s253 = smul.addr %s252, 8
        %s254 = scalar_lea.vmem [#allocation8], %s253
        %p255 = pneg %p149
        %p256 = pneg %p146
        %s257 = sand.u32 %s136, 1
        %s258 = scalar_lea.sflag [#allocation10], %s257
        %s259 = sand.u32 %s136, 1
        %s260 = smul.addr %s259, 8
        %s261 = scalar_lea.vmem [#allocation9], %s260
        %s262 = sld [smem:[#allocation2]]
        %v263 = vld [vmem:[%s218] sm:$0xff]
        %v264 = vld [vmem:[%s227] sm:$0xff]
        %v265 = vmul.f32 %v263, %v263
        %v266 = vmul.f32 %v264, %v264
        %v267 = vadd.f32 %v265, %v266
        %vm268 = vcmp.gt.f32.partialorder %v267, 0.0
        %v269 = vsel %vm268, %v267, 1.0
        %v270 = vrsqrt.pop %v269
        %v271 = vmul.f32 %v267, %v270
        %v272 = vstv %s262
        %v273 = vadd.f32 %v271, %v272
        %v274 = vmax.f32 %v273, 0.0
        %v275 = vmul.f32 %v274, %v270
        %v276 = vmul.f32 %v275, %v263
        %v277 = vsel %vm268, %v276, %v274
        %278 = vst [vmem:[%s254] sm:$0xff] %v277
        %v279 = vmul.f32 %v275, %v264
        %v280 = vsel %vm268, %v279, 0.0
        %281 = vst [vmem:[%s261] sm:$0xff] %v280
        %s282 = sand.u32 %s110, 1
        %s283 = scalar_lea.sflag [#allocation5], %s282
        %s284 = sand.u32 %s110, 1
        %s285 = smul.addr %s284, 8
        %s286 = scalar_lea.vmem [#allocation8], %s285
        %s287 = sand.u32 %s136, 1
        %s288 = scalar_lea.sflag [#allocation10], %s287
        %s289 = sand.u32 %s136, 1
        %s290 = smul.addr %s289, 8
        %s291 = scalar_lea.vmem [#allocation9], %s290
        // Predicated region
        $region41: #{tpu_custom_call.1} parent=31 // pred_check
          %p292 = pneg %p120
        $region42: #{tpu_custom_call.1} parent=31 // pred_check_branch
          %294 = sbr.rel (%p292) target = $region44
        $region43: #{tpu_custom_call.1} parent=31 // pred_region
          %s296 = ssub.s32 128, 128
          %297 = vsyncadd %s283, %s296
          %s298 = smul.addr %s29, 128
          %s299 = scalar_lea.hbm %s3, %s298
          %s301 = sshll.u32 %s286, 4
          %s302 = int_to_ptr.vmem [resolvable:$true] %s301
          %304 = dma.vmem_to_hbm [thread:$0]  %s302, 128, %s299, %s283
        $region44: #{tpu_custom_call.1} parent=31 // pred_fallthru
          _
        // Predicated region
        $region45: #{tpu_custom_call.1} parent=31 // pred_check
          %p305 = pneg %p146
        $region46: #{tpu_custom_call.1} parent=31 // pred_check_branch
          %307 = sbr.rel (%p305) target = $region48
        $region47: #{tpu_custom_call.1} parent=31 // pred_region
          %s309 = ssub.s32 128, 128
          %310 = vsyncadd %s288, %s309
          %s311 = smul.addr %s29, 128
          %s312 = scalar_lea.hbm %s4, %s311
          %s314 = sshll.u32 %s291, 4
          %s315 = int_to_ptr.vmem [resolvable:$true] %s314
          %317 = dma.vmem_to_hbm [thread:$0]  %s315, 128, %s312, %s288
        $region48: #{tpu_custom_call.1} parent=31 // pred_fallthru
          _
      $region32: #{tpu_custom_call.1} parent=5 // pred_fallthru
        _
      %p318 = scmp.le.s32.totalorder 2, %s24
      // Predicated region
      $region49: #{tpu_custom_call.1} parent=5 // pred_check
        %p319 = pneg %p318
      $region50: #{tpu_custom_call.1} parent=5 // pred_check_branch
        %321 = sbr.rel (%p319) target = $region52
      $region51: #{tpu_custom_call.1} parent=5 // pred_region
        %s322 = ssub.s32 %s24, 2
        // Predicated region
        $region53: #{tpu_custom_call.1} parent=51 // pred_check
          %p323 = pneg %p126
        $region54: #{tpu_custom_call.1} parent=51 // pred_check_branch
          %325 = sbr.rel (%p323) target = $region56
        $region55: #{tpu_custom_call.1} parent=51 // pred_region
          %s326 = sand.u32 %s111, 1
          %s327 = scalar_lea.sflag [#allocation5], %s326
          %s328 = sand.u32 %s111, 1
          %s329 = smul.addr %s328, 8
          %s330 = scalar_lea.vmem [#allocation8], %s329
          %331 = dma.done %s327, 128
        $region56: #{tpu_custom_call.1} parent=51 // pred_fallthru
          _
        // Predicated region
        $region57: #{tpu_custom_call.1} parent=51 // pred_check
          %p332 = pneg %p152
        $region58: #{tpu_custom_call.1} parent=51 // pred_check_branch
          %334 = sbr.rel (%p332) target = $region60
        $region59: #{tpu_custom_call.1} parent=51 // pred_region
          %s335 = sand.u32 %s137, 1
          %s336 = scalar_lea.sflag [#allocation10], %s335
          %s337 = sand.u32 %s137, 1
          %s338 = smul.addr %s337, 8
          %s339 = scalar_lea.vmem [#allocation9], %s338
          %340 = dma.done %s336, 128
        $region60: #{tpu_custom_call.1} parent=51 // pred_fallthru
          _
      $region52: #{tpu_custom_call.1} parent=5 // pred_fallthru
        _
    $region6: #{tpu_custom_call.1} parent=1 // loop_footer
      %s28 = sadd.s32 1, %s24
    $region7: #{tpu_custom_call.1} parent=1 // loop_footer_branch
      %23 = sbr.rel target = $region3
    $region8: #{tpu_custom_call.1} parent=1 // loop_exit
      _
    %341 = vsyncpa [#allocation4], 1
    %s342 = scalar_lea.sflag [#allocation4], 1
    %343 = vsyncpa %s342, 1
    %344 = vsyncpa [#allocation7], 1
    %s345 = scalar_lea.sflag [#allocation7], 1
    %346 = vsyncpa %s345, 1
    %347 = vsyncpa [#allocation5], 1
    %s348 = scalar_lea.sflag [#allocation5], 1
    %349 = vsyncpa %s348, 1
    %350 = vsyncpa [#allocation10], 1
    %s351 = scalar_lea.sflag [#allocation10], 1
    %352 = vsyncpa %s351, 1

</llo_original>
